<compile_context>
chip_gen: v7x
topology: tpu7x:2x2x1
jax: 0.10.0
libtpu: 0.0.40
codegen_flags: <defaults>
</compile_context>

<pallas_src>
import functools

import jax
import jax.numpy as jnp
from jax.experimental import pallas as pl
from jax.experimental.pallas import tpu as pltpu


# ----------------------------- kernels -------------------------------------


def _sigmoid_conv1x1_kernel(x_ref, w_ref, o_ref):
    # x_ref: (1, C, R_TILE, 128) VMEM   w_ref: (1, C) SMEM
    # o_ref: (1, 1, R_TILE, 128) float32
    c_dim = x_ref.shape[1]
    acc = x_ref[0, 0] * w_ref[0, 0]            # (R_TILE, 128) dense vregs
    for c in range(1, c_dim):
        acc = acc + x_ref[0, c] * w_ref[0, c]  # VPU scalar-broadcast FMA chain
    o_ref[0, 0] = jax.nn.sigmoid(acc).astype(o_ref.dtype)


def _argmax_conv1x1_kernel(x_ref, w_ref, o_ref):
    # x_ref: (1, C, R_TILE, 128) VMEM   w_ref: (K, C) SMEM
    # o_ref: (1, 1, R_TILE, 128) int32
    c_dim = x_ref.shape[1]
    k_dim = w_ref.shape[0]

    # Channel-outer: load each x[c] slab once, update all K running logits.
    x0 = x_ref[0, 0]
    accs = [x0 * w_ref[k, 0] for k in range(k_dim)]
    for c in range(1, c_dim):
        xc = x_ref[0, c]
        for k in range(k_dim):
            accs[k] = accs[k] + xc * w_ref[k, c]

    best = accs[0]
    best_idx = jnp.zeros(best.shape, dtype=jnp.int32)
    for k in range(1, k_dim):
        take = accs[k] > best                  # strict > keeps first-occurrence ties
        best = jnp.where(take, accs[k], best)
        best_idx = jnp.where(take, jnp.int32(k), best_idx)
    o_ref[0, 0] = best_idx


# ----------------------------- wrappers ------------------------------------


def _run_pixel_kernel(kernel, x4, w2, out_dtype, r_tile):
    # x4: (N, C, R, 128) sublane/lane-dense pixel slabs
    n, c, r, _ = x4.shape
    n_row_tiles = pl.cdiv(r, r_tile)           # ragged last block masked by Pallas
    return pl.pallas_call(
        kernel,
        out_shape=jax.ShapeDtypeStruct((n, 1, r, 128), out_dtype),
        grid_spec=pltpu.PrefetchScalarGridSpec(
            num_scalar_prefetch=0,
            grid=(n, n_row_tiles),
            in_specs=[
                pl.BlockSpec((1, c, r_tile, 128), lambda b, i: (b, 0, i, 0)),
                # tiny (K, C) weight as SMEM scalars (no padded VMEM tile / DMA)
                pl.BlockSpec(memory_space=pltpu.MemorySpace.SMEM),
            ],
            out_specs=pl.BlockSpec((1, 1, r_tile, 128), lambda b, i: (b, 0, i, 0)),
        ),
        compiler_params=pltpu.CompilerParams(
            dimension_semantics=("parallel", "parallel"),
        ),
    )(x4, w2)


@functools.partial(jax.jit, static_argnames=("num_class",))
def final_forward(img_in, conv_weight, *, num_class):
    """img_in: (N, C, H, W) float32. conv_weight: (out_ch, in_ch, 1, 1)."""
    n, c, h, wd = img_in.shape
    p = h * wd
    p128 = ((p + 127) // 128) * 128

    x3 = img_in.reshape(n, c, p)                       # free reshape of NCHW
    if p128 != p:
        # Only pad to the 128-pixel lane multiple (needed for the dense layout).
        x3 = jnp.pad(x3, ((0, 0), (0, 0), (0, p128 - p)))
    r = p128 // 128
    x4 = x3.reshape(n, c, r, 128)                      # free: contiguous slabs

    k = conv_weight.shape[0]
    w2 = conv_weight.reshape(k, c)                     # (out_ch, in_ch)

    # ~4 MiB of input per block. Double-buffered (in + out) stays well under
    # the scoped-VMEM default on v5e (16 MiB) / v6e / v7x (32 MiB).
    target_in_bytes = 4 * 1024 * 1024
    desired = max(8, (target_in_bytes // (c * 128 * 4)) // 8 * 8)
    r_tile = r if desired >= r else desired            # full extent or multiple of 8
    # v7x has 2 TensorCores: guarantee >= 2 independent grid steps when possible.
    if n * pl.cdiv(r, r_tile) < 2 and r > 8:
        r_tile = max(8, (r // 2) // 8 * 8)

    if num_class == 2:
        out = _run_pixel_kernel(_sigmoid_conv1x1_kernel, x4, w2, jnp.float32, r_tile)
    else:
        # torch returns int64; we emit int32 (same values, documented deviation).
        out = _run_pixel_kernel(_argmax_conv1x1_kernel, x4, w2, jnp.int32, r_tile)

    # (N, 1, R, 128) -> (N, 1, H, W), dropping lane padding if any.
    return out.reshape(n, 1, p128)[:, :, :p].reshape(n, 1, h, wd)


# ----------------------------- demo ----------------------------------------

if __name__ == "__main__":
    key = jax.random.PRNGKey(0)
    k_x, k_w2, k_wm = jax.random.split(key, 3)

    N, C, H, W = 2, 4, 16, 16
    x = jax.random.normal(k_x, (N, C, H, W), dtype=jnp.float32)

    # --- binary branch (num_class == 2): conv weight (1, C, 1, 1) ---
    w_bin = jax.random.normal(k_w2, (1, C, 1, 1), dtype=jnp.float32) * 0.1
    y_bin = final_forward(x, w_bin, num_class=2)
    jax.block_until_ready(y_bin)
    assert y_bin.shape == (N, 1, H, W) and y_bin.dtype == jnp.float32

    # --- multi-class branch (num_class == 5): conv weight (5, C, 1, 1) ---
    NUM_CLASS = 5
    w_mc = jax.random.normal(k_wm, (NUM_CLASS, C, 1, 1), dtype=jnp.float32) * 0.1
    y_mc = final_forward(x, w_mc, num_class=NUM_CLASS)
    jax.block_until_ready(y_mc)
    assert y_mc.shape == (N, 1, H, W) and y_mc.dtype == jnp.int32

    # quick reference check in plain JAX
    x_nhwc = jnp.transpose(x, (0, 2, 3, 1))
    ref_bin = jax.nn.sigmoid(x_nhwc @ w_bin.reshape(1, C).T)
    ref_bin = jnp.transpose(ref_bin, (0, 3, 1, 2))
    assert jnp.allclose(y_bin, ref_bin, atol=1e-5)

    logits = x_nhwc @ w_mc.reshape(NUM_CLASS, C).T
    ref_mc = jnp.argmax(logits, axis=-1)[:, None, :, :].astype(jnp.int32)
    assert jnp.array_equal(y_mc, ref_mc)

    print("KERNEL_OK")
</pallas_src>

<mosaic_0001>
module attributes {stable_mosaic.version = 11 : i64} {
  func.func @_sigmoid_conv1x1_kernel(%arg0: i32, %arg1: i32, %arg2: memref<1x4x2x128xf32, #tpu.memory_space<vmem>>, %arg3: memref<1x4xf32, #tpu.memory_space<smem>>, %arg4: memref<1x1x2x128xf32, #tpu.memory_space<vmem>>) attributes {dimension_semantics = [#tpu.dimension_semantics<parallel>, #tpu.dimension_semantics<parallel>], iteration_bounds = array<i64: 2, 1>, scalar_prefetch = 0 : i64, scratch_operands = 0 : i64, tpu.core_type = #tpu.core_type<tc>, window_params = [{transform_indices = @transform_0, window_bounds = array<i64: 1, 4, 2, 128>}, {transform_indices = @transform_1, window_bounds = array<i64: 1, 4>}, {transform_indices = @transform_2, window_bounds = array<i64: 1, 1, 2, 128>}]} {
    %c0 = arith.constant 0 : index
    %c0_0 = arith.constant 0 : index
    %c0_1 = arith.constant 0 : index
    %c0_2 = arith.constant 0 : index
    %0 = vector.load %arg2[%c0, %c0_0, %c0_1, %c0_2] : memref<1x4x2x128xf32, #tpu.memory_space<vmem>>, vector<1x1x2x128xf32>
    %1 = vector.shape_cast %0 : vector<1x1x2x128xf32> to vector<2x128xf32>
    %c0_3 = arith.constant 0 : index
    %c0_4 = arith.constant 0 : index
    %2 = memref.load %arg3[%c0_3, %c0_4] : memref<1x4xf32, #tpu.memory_space<smem>>
    %3 = vector.broadcast %2 : f32 to vector<2x128xf32>
    %4 = arith.mulf %1, %3 : vector<2x128xf32>
    %c0_5 = arith.constant 0 : index
    %c1 = arith.constant 1 : index
    %c0_6 = arith.constant 0 : index
    %c0_7 = arith.constant 0 : index
    %5 = vector.load %arg2[%c0_5, %c1, %c0_6, %c0_7] : memref<1x4x2x128xf32, #tpu.memory_space<vmem>>, vector<1x1x2x128xf32>
    %6 = vector.shape_cast %5 : vector<1x1x2x128xf32> to vector<2x128xf32>
    %c0_8 = arith.constant 0 : index
    %c1_9 = arith.constant 1 : index
    %7 = memref.load %arg3[%c0_8, %c1_9] : memref<1x4xf32, #tpu.memory_space<smem>>
    %8 = vector.broadcast %7 : f32 to vector<2x128xf32>
    %9 = arith.mulf %6, %8 : vector<2x128xf32>
    %10 = arith.addf %4, %9 : vector<2x128xf32>
    %c0_10 = arith.constant 0 : index
    %c2 = arith.constant 2 : index
    %c0_11 = arith.constant 0 : index
    %c0_12 = arith.constant 0 : index
    %11 = vector.load %arg2[%c0_10, %c2, %c0_11, %c0_12] : memref<1x4x2x128xf32, #tpu.memory_space<vmem>>, vector<1x1x2x128xf32>
    %12 = vector.shape_cast %11 : vector<1x1x2x128xf32> to vector<2x128xf32>
    %c0_13 = arith.constant 0 : index
    %c2_14 = arith.constant 2 : index
    %13 = memref.load %arg3[%c0_13, %c2_14] : memref<1x4xf32, #tpu.memory_space<smem>>
    %14 = vector.broadcast %13 : f32 to vector<2x128xf32>
    %15 = arith.mulf %12, %14 : vector<2x128xf32>
    %16 = arith.addf %10, %15 : vector<2x128xf32>
    %c0_15 = arith.constant 0 : index
    %c3 = arith.constant 3 : index
    %c0_16 = arith.constant 0 : index
    %c0_17 = arith.constant 0 : index
    %17 = vector.load %arg2[%c0_15, %c3, %c0_16, %c0_17] : memref<1x4x2x128xf32, #tpu.memory_space<vmem>>, vector<1x1x2x128xf32>
    %18 = vector.shape_cast %17 : vector<1x1x2x128xf32> to vector<2x128xf32>
    %c0_18 = arith.constant 0 : index
    %c3_19 = arith.constant 3 : index
    %19 = memref.load %arg3[%c0_18, %c3_19] : memref<1x4xf32, #tpu.memory_space<smem>>
    %20 = vector.broadcast %19 : f32 to vector<2x128xf32>
    %21 = arith.mulf %18, %20 : vector<2x128xf32>
    %22 = arith.addf %16, %21 : vector<2x128xf32>
    %23 = arith.negf %22 : vector<2x128xf32>
    %24 = math.exp %23 : vector<2x128xf32>
    %cst = arith.constant 1.000000e+00 : f32
    %25 = vector.broadcast %cst : f32 to vector<2x128xf32>
    %26 = arith.addf %25, %24 : vector<2x128xf32>
    %27 = arith.divf %25, %26 : vector<2x128xf32>
    %c0_20 = arith.constant 0 : index
    %c0_21 = arith.constant 0 : index
    %c0_22 = arith.constant 0 : index
    %c0_23 = arith.constant 0 : index
    %28 = vector.load %arg4[%c0_20, %c0_21, %c0_22, %c0_23] : memref<1x1x2x128xf32, #tpu.memory_space<vmem>>, vector<1x1x2x128xf32>
    %29 = vector.shape_cast %28 : vector<1x1x2x128xf32> to vector<2x128xf32>
    %30 = vector.shape_cast %27 : vector<2x128xf32> to vector<1x1x2x128xf32>
    tpu.vector_store %arg4[%c0_20, %c0_21, %c0_22, %c0_23], %30 {strides = array<i32>} : memref<1x1x2x128xf32, #tpu.memory_space<vmem>>, vector<1x1x2x128xf32>,
    return
  }
  func.func @transform_0(%arg0: i32, %arg1: i32) -> (i32, i32, i32, i32) {
    %c0_i32 = arith.constant 0 : i32
    %c0_i32_0 = arith.constant 0 : i32
    %c0_i32_1 = arith.constant 0 : i32
    return %arg0, %c0_i32, %arg1, %c0_i32_0 : i32, i32, i32, i32
  }
  func.func @transform_1(%arg0: i32, %arg1: i32) -> (i32, i32) {
    %c0_i32 = arith.constant 0 : i32
    %c0_i32_0 = arith.constant 0 : i32
    %c0_i32_1 = arith.constant 0 : i32
    return %c0_i32, %c0_i32_0 : i32, i32
  }
  func.func @transform_2(%arg0: i32, %arg1: i32) -> (i32, i32, i32, i32) {
    %c0_i32 = arith.constant 0 : i32
    %c0_i32_0 = arith.constant 0 : i32
    %c0_i32_1 = arith.constant 0 : i32
    return %arg0, %c0_i32, %arg1, %c0_i32_0 : i32, i32, i32, i32
  }
}

</mosaic_0001>

<llo_original>
// kernel: final_forward.1
$region0: #{final_forward.1}
  #allocation0 [shape = 'u32[]', space=smem, size = 0x4, offset = 0x4, fixed_abs, tag = 'smem constant byte address 0x4 - core index']
  #allocation1 [shape = 'u32[144,128]{1,0:T(1,128)}', space=vmem, size = 0x12000, scoped, tag = 'internal scratch']
  %s0 = inlined_call_operand.vmem [shape: f32[2,4,2,128], index: 0, kind: input, shape index: {}]
  %s1 = inlined_call_operand.vmem [shape: f32[1,4], index: 1, kind: input, shape index: {}]
  %s2 = inlined_call_operand.vmem [shape: f32[2,1,2,128], index: 2, kind: output, shape index: {}]
  %s3 = sld [smem:[#allocation0]]
  $region45: #{final_forward.1} parent=0
    _
  %s5 = ssub.s32 1, %s3
  %s6 = scalar_select 0, %s5, %s3
  $region1: #{final_forward.1} parent=0
    #allocation2 [shape = 'u8[512]{0}', space=smem, size = 0x200, scoped, tag = 'input window, operand 1, single buffered']
    #allocation3 [shape = 's32[2]{0}', space=sflag, size = 0x8, scoped, tag = 'scoped memory for final_forward.1']
    %7 = vsyncpa [#allocation3], 0
    loop: start=0, step=1, limit=4
    $region2: #{final_forward.1} parent=1 // loop_pre_header
      _
    $region3: #{final_forward.1} parent=1 // loop_header
      %s9 = sphi 0, %s13
      %p10 = scmp.ge.s32.totalorder %s9, 4
      %s16 = sphi 0, %s28
      %s17 = sphi 0, %s24
      %s18 = sphi 0, %s16
      %s19 = sphi 0, %s17
      %s20 = sphi 0, %s18
      %s21 = sphi 0, %s19
      %s33 = sphi 0, %s35
      %s36 = sphi 0, %s33
      %s37 = sphi 0, %s36
      %s53 = sphi 0, %s37
      %s57 = sphi 0, %s57
      %s59 = sphi 0, %s57
      %s60 = sphi 0, %s59
      %s74 = sphi 0, %s60
      %s82 = sphi 0, %s84
      %s85 = sphi 0, %s82
      %s86 = sphi 0, %s85
      %s102 = sphi 0, %s86
    $region4: #{final_forward.1} parent=1 // loop_header_branch
      %12 = sbr.rel (%p10) target = $region8
    $region5: #{final_forward.1} parent=1 // loop_body
      %s14 = ssub.s32 %s9, 1
      %s15 = ssub.s32 %s9, 2
      %s22 = sadd.s32 1, %s17
      %p23 = scmp.ge.s32.totalorder %s22, 1
      %s24 = scalar_select %p23, 0, %s22
      %s25 = sadd.s32 1, %s16
      %s26 = scalar_select %p23, %s25, %s16
      %p27 = scmp.ge.s32.totalorder %s26, 2
      %s28 = scalar_select %p27, 0, %s26
      %s29 = ssub.s32 %s16, %s28
      %s30 = ssub.s32 %s17, %s24
      %s31 = sor.u32 %s29, %s30
      %p32 = scmp.eq.s32.totalorder %s31, 0
      %s34 = sadd.s32 %s33, 1
      %s35 = scalar_select %p32, %s33, %s34
      %p38 = pneg %p32
      %p39 = scmp.eq.s32.totalorder %s9, 1
      %p40 = por %p38, %p39
      %p41 = scmp.ne.s32.totalorder %s33, %s36
      %p42 = scmp.eq.s32.totalorder %s9, 0
      %p43 = por %p41, %p42
      %p44 = scmp.ne.s32.totalorder %s33, %s36
      %p45 = scmp.eq.s32.totalorder %s14, 1
      %p46 = por %p44, %p45
      %p47 = scmp.ne.s32.totalorder %s36, %s37
      %p48 = scmp.eq.s32.totalorder %s14, 0
      %p49 = por %p47, %p48
      %p50 = scmp.ne.s32.totalorder %s36, %s37
      %p51 = scmp.eq.s32.totalorder %s15, 1
      %p52 = por %p50, %p51
      %p54 = scmp.ne.s32.totalorder %s37, %s53
      %p55 = scmp.eq.s32.totalorder %s15, 0
      %p56 = por %p54, %p55
      %s58 = sadd.s32 %s57, 1
      %p61 = scmp.eq.s32.totalorder %s9, 1
      %p62 = scmp.ne.s32.totalorder %s57, %s59
      %p63 = scmp.eq.s32.totalorder %s9, 0
      %p64 = por %p62, %p63
      %p65 = scmp.ne.s32.totalorder %s57, %s59
      %p66 = scmp.eq.s32.totalorder %s14, 1
      %p67 = por %p65, %p66
      %p68 = scmp.ne.s32.totalorder %s59, %s60
      %p69 = scmp.eq.s32.totalorder %s14, 0
      %p70 = por %p68, %p69
      %p71 = scmp.ne.s32.totalorder %s59, %s60
      %p72 = scmp.eq.s32.totalorder %s15, 1
      %p73 = por %p71, %p72
      %p75 = scmp.ne.s32.totalorder %s60, %s74
      %p76 = scmp.eq.s32.totalorder %s15, 0
      %p77 = por %p75, %p76
      %s78 = ssub.s32 %s16, %s28
      %s79 = ssub.s32 %s17, %s24
      %s80 = sor.u32 %s78, %s79
      %p81 = scmp.eq.s32.totalorder %s80, 0
      %s83 = sadd.s32 %s82, 1
      %s84 = scalar_select %p81, %s82, %s83
      %p87 = pneg %p81
      %p88 = scmp.eq.s32.totalorder %s9, 1
      %p89 = por %p87, %p88
      %p90 = scmp.ne.s32.totalorder %s82, %s85
      %p91 = scmp.eq.s32.totalorder %s9, 0
      %p92 = por %p90, %p91
      %p93 = scmp.ne.s32.totalorder %s82, %s85
      %p94 = scmp.eq.s32.totalorder %s14, 1
      %p95 = por %p93, %p94
      %p96 = scmp.ne.s32.totalorder %s85, %s86
      %p97 = scmp.eq.s32.totalorder %s14, 0
      %p98 = por %p96, %p97
      %p99 = scmp.ne.s32.totalorder %s85, %s86
      %p100 = scmp.eq.s32.totalorder %s15, 1
      %p101 = por %p99, %p100
      %p103 = scmp.ne.s32.totalorder %s86, %s102
      %p104 = scmp.eq.s32.totalorder %s15, 0
      %p105 = por %p103, %p104
      %p106 = scmp.le.s32.totalorder 1, %s9
      %p107 = scmp.lt.s32.totalorder %s9, 3
      %p108 = pnand %p106, %p107
      %p109 = pneg %p108
      // Predicated region
      $region9: #{final_forward.1} parent=5 // pred_check
        _
      $region10: #{final_forward.1} parent=5 // pred_check_branch
        %111 = sbr.rel (%p108) target = $region12
      $region11: #{final_forward.1} parent=5 // pred_region
        %s112 = ssub.s32 %s9, 1
        // Predicated region
        $region13: #{final_forward.1} parent=11 // pred_check
          %p113 = pneg %p70
        $region14: #{final_forward.1} parent=11 // pred_check_branch
          %115 = sbr.rel (%p113) target = $region16
        $region15: #{final_forward.1} parent=11 // pred_region
          %s117 = ssub.s32 16, 16
          %118 = vsyncadd [#allocation3], %s117
          %s120 = sshll.u32 %s1, 4
          %s121 = int_to_ptr.vmem [resolvable:$true] %s120
          %123 = dma.vmem_to_smem %s121, 16, [#allocation2], [#allocation3]
        $region16: #{final_forward.1} parent=11 // pred_fallthru
          _
      $region12: #{final_forward.1} parent=5 // pred_fallthru
        _
      %p124 = scmp.lt.s32.totalorder %s9, 2
      // Predicated region
      $region17: #{final_forward.1} parent=5 // pred_check
        %p125 = pneg %p124
      $region18: #{final_forward.1} parent=5 // pred_check_branch
        %127 = sbr.rel (%p125) target = $region20
      $region19: #{final_forward.1} parent=5 // pred_region
        // Predicated region
        $region21: #{final_forward.1} parent=19 // pred_check
          %p128 = pneg %p43
        $region22: #{final_forward.1} parent=19 // pred_check_branch
          %130 = sbr.rel (%p128) target = $region24
        $region23: #{final_forward.1} parent=19 // pred_region
          %p131 = scmp.lt.s32.totalorder %s16, 1
          %s132 = scalar_select %p131, %s16, 1
          %p133 = scmp.lt.s32.totalorder %s17, 0
          %s134 = scalar_select %p133, %s17, 0
          %s135 = smul.addr %s132, 4
          %s136 = sadd.s32 %s134, %s135
          %s137 = smul.addr %s136, 2
          %s138 = scalar_lea.vmem %s0, %s137
        $region24: #{final_forward.1} parent=19 // pred_fallthru
          _
      $region20: #{final_forward.1} parent=5 // pred_fallthru
        _
      %p139 = scmp.le.s32.totalorder 1, %s9
      %p140 = scmp.lt.s32.totalorder %s9, 3
      %p141 = pnand %p139, %p140
      %p142 = pneg %p141
      // Predicated region
      $region25: #{final_forward.1} parent=5 // pred_check
        _
      $region26: #{final_forward.1} parent=5 // pred_check_branch
        %144 = sbr.rel (%p141) target = $region28
      $region27: #{final_forward.1} parent=5 // pred_region
        %s145 = ssub.s32 %s9, 1
        // Predicated region
        $region29: #{final_forward.1} parent=27 // pred_check
          %p146 = pneg %p70
        $region30: #{final_forward.1} parent=27 // pred_check_branch
          %148 = sbr.rel (%p146) target = $region32
        $region31: #{final_forward.1} parent=27 // pred_region
          %149 = dma.done [#allocation3], 16
        $region32: #{final_forward.1} parent=27 // pred_fallthru
          _
        %150 = sfence
        %p151 = scmp.lt.s32.totalorder %s18, 1
        %s152 = scalar_select %p151, %s18, 1
        %p153 = scmp.lt.s32.totalorder %s19, 0
        %s154 = scalar_select %p153, %s19, 0
        %s155 = smul.addr %s152, 4
        %s156 = sadd.s32 %s154, %s155
        %s157 = smul.addr %s156, 2
        %s158 = scalar_lea.vmem %s0, %s157
        %p159 = pneg %p49
        %p160 = pneg %p46
        %p161 = pneg %p70
        %p162 = pneg %p67
        %p163 = pneg %p98
        %p164 = pneg %p95
        %p165 = scmp.lt.s32.totalorder %s18, 1
        %s166 = scalar_select %p165, %s18, 1
        %p167 = scmp.lt.s32.totalorder %s19, 0
        %s168 = scalar_select %p167, %s19, 0
        %s169 = sadd.s32 %s168, %s166
        %s170 = smul.addr %s169, 2
        %s171 = scalar_lea.vmem %s2, %s170
        %p172 = scmp.lt.s32.totalorder %s18, 1
        %s173 = scalar_select %p172, %s18, 1
        %p174 = scmp.lt.s32.totalorder %s19, 0
        %s175 = scalar_select %p174, %s19, 0
        %s176 = smul.addr %s173, 4
        %s177 = sadd.s32 %s175, %s176
        %s178 = smul.addr %s177, 2
        %s179 = scalar_lea.vmem %s0, %s178
        %p180 = scmp.lt.s32.totalorder %s18, 1
        %s181 = scalar_select %p180, %s18, 1
        %p182 = scmp.lt.s32.totalorder %s19, 0
        %s183 = scalar_select %p182, %s19, 0
        %s184 = sadd.s32 %s183, %s181
        %s185 = smul.addr %s184, 2
        %s186 = scalar_lea.vmem %s2, %s185
        %v187 = vld [vmem:[%s179] sm:$0x3]
        %s188 = sld [smem:[#allocation2]]
        %v189 = vstv %s188
        %v190 = vmul.f32 %v187, %v189
        %s191 = scalar_lea.vmem %s179, 2
        %v192 = vld [vmem:[%s191] sm:$0x3]
        %s193 = sld [smem:[#allocation2 + $0x1]]
        %v194 = vstv %s193
        %v195 = vmul.f32 %v192, %v194
        %v196 = vadd.f32 %v190, %v195
        %s197 = scalar_lea.vmem %s179, 4
        %v198 = vld [vmem:[%s197] sm:$0x3]
        %s199 = sld [smem:[#allocation2 + $0x2]]
        %v200 = vstv %s199
        %v201 = vmul.f32 %v198, %v200
        %v202 = vadd.f32 %v196, %v201
        %s203 = scalar_lea.vmem %s179, 6
        %v204 = vld [vmem:[%s203] sm:$0x3]
        %s205 = sld [smem:[#allocation2 + $0x3]]
        %v206 = vstv %s205
        %v207 = vmul.f32 %v204, %v206
        %v208 = vadd.f32 %v202, %v207
        %v209 = vxor.u32 %v208, 2147483648
        %v210 = vmul.f32 %v209, 1.442695
        %v211 = vpow.pop %v210
        %v212 = vadd.f32 %v211, 1.0
        %v213 = vrcp.pop %v212
        %v214 = vmul.f32 1.0, %v213
        %215 = vst [vmem:[%s186] sm:$0x3] %v214
        %p216 = scmp.lt.s32.totalorder %s18, 1
        %s217 = scalar_select %p216, %s18, 1
        %p218 = scmp.lt.s32.totalorder %s19, 0
        %s219 = scalar_select %p218, %s19, 0
        %s220 = sadd.s32 %s219, %s217
        %s221 = smul.addr %s220, 2
        %s222 = scalar_lea.vmem %s2, %s221
        // Predicated region
        $region33: #{final_forward.1} parent=27 // pred_check
          %p223 = pneg %p95
        $region34: #{final_forward.1} parent=27 // pred_check_branch
          %225 = sbr.rel (%p223) target = $region36
        $region35: #{final_forward.1} parent=27 // pred_region
          _
        $region36: #{final_forward.1} parent=27 // pred_fallthru
          _
      $region28: #{final_forward.1} parent=5 // pred_fallthru
        _
      %p226 = scmp.le.s32.totalorder 2, %s9
      // Predicated region
      $region37: #{final_forward.1} parent=5 // pred_check
        %p227 = pneg %p226
      $region38: #{final_forward.1} parent=5 // pred_check_branch
        %229 = sbr.rel (%p227) target = $region40
      $region39: #{final_forward.1} parent=5 // pred_region
        %s230 = ssub.s32 %s9, 2
        // Predicated region
        $region41: #{final_forward.1} parent=39 // pred_check
          %p231 = pneg %p101
        $region42: #{final_forward.1} parent=39 // pred_check_branch
          %233 = sbr.rel (%p231) target = $region44
        $region43: #{final_forward.1} parent=39 // pred_region
          %p234 = scmp.lt.s32.totalorder %s20, 1
          %s235 = scalar_select %p234, %s20, 1
          %p236 = scmp.lt.s32.totalorder %s21, 0
          %s237 = scalar_select %p236, %s21, 0
          %s238 = sadd.s32 %s237, %s235
          %s239 = smul.addr %s238, 2
          %s240 = scalar_lea.vmem %s2, %s239
        $region44: #{final_forward.1} parent=39 // pred_fallthru
          _
      $region40: #{final_forward.1} parent=5 // pred_fallthru
        _
    $region6: #{final_forward.1} parent=1 // loop_footer
      %s13 = sadd.s32 1, %s9
    $region7: #{final_forward.1} parent=1 // loop_footer_branch
      %8 = sbr.rel target = $region3
    $region8: #{final_forward.1} parent=1 // loop_exit
      _
    %241 = vsyncpa [#allocation3], 1
    %s242 = scalar_lea.sflag [#allocation3], 1
    %243 = vsyncpa %s242, 1

</llo_original>
